<compile_context>
chip_gen: v5e
topology: v5e:2x2
jax: 0.10.0
libtpu: 0.0.40
codegen_flags: <defaults>
</compile_context>

<pallas_src>
import functools

import jax
import jax.numpy as jnp
from jax.experimental import pallas as pl
from jax.experimental.pallas import tpu as pltpu

LANE = 128          # lane width: pad feature axes to this
SUBLANE = 8         # sublane multiple for the batch axis
IN_FEATURES = 10
OUT_FEATURES = 5


def _linear_kernel(x_ref, w_ref, b_ref, o_ref, *, k_dim):
    """Lane-dense linear: o = x @ w + b, computed as k_dim VPU FMAs.

    x_ref: [B_pad, 128]  (cols >= k_dim are zero-padding)
    w_ref: [128, 128]    (rows >= k_dim and cols >= OUT are zero)
    b_ref: [1, 128]      (cols >= OUT are zero)
    o_ref: [B_pad, 128]
    """
    x = x_ref[...]
    w = w_ref[...]
    # Start the accumulator from the (row-broadcast) bias.
    acc = jnp.broadcast_to(b_ref[...], o_ref.shape).astype(jnp.float32)
    # K is tiny (10): unrolled broadcast multiply-adds on the VPU; no MXU.
    for k in range(k_dim):
        acc = acc + x[:, k:k + 1] * w[k:k + 1, :]
    o_ref[...] = acc.astype(o_ref.dtype)


def linear_pallas(x, w_padded, b_padded, *, in_features, out_features):
    """y = x @ W + b with x:[B, in_features]; W/b pre-padded lane-dense.

    w_padded: [128, 128] with the real [in_features, out_features] block in
              the top-left corner and zeros elsewhere.
    b_padded: [1, 128] with the real bias in the first out_features lanes.
    """
    B, IN = x.shape
    assert IN == in_features
    B_pad = ((B + SUBLANE - 1) // SUBLANE) * SUBLANE

    # Zero-pad x to a lane-dense [B_pad, 128] slab (one-time, outside kernel).
    x_p = jnp.zeros((B_pad, LANE), x.dtype).at[:B, :IN].set(x)

    kernel = functools.partial(_linear_kernel, k_dim=in_features)

    y_p = pl.pallas_call(
        kernel,
        out_shape=jax.ShapeDtypeStruct((B_pad, LANE), x.dtype),
        # No grid: whole (tiny) problem lives in VMEM for a single invocation.
        in_specs=[
            pl.BlockSpec(memory_space=pltpu.MemorySpace.VMEM),  # x
            pl.BlockSpec(memory_space=pltpu.MemorySpace.VMEM),  # W
            pl.BlockSpec(memory_space=pltpu.MemorySpace.VMEM),  # b
        ],
        out_specs=pl.BlockSpec(memory_space=pltpu.MemorySpace.VMEM),
        cost_estimate=pl.CostEstimate(
            flops=2 * B * in_features * out_features,
            transcendentals=0,
            bytes_accessed=4 * (B * in_features
                                + in_features * out_features
                                + out_features
                                + B * out_features),
        ),
    )(x_p, w_padded, b_padded)

    # Slice the logical output back out of the lane-dense slab.
    return y_p[:B, :out_features]


class SimpleTestModelPallas:
    """JAX/Pallas port of SimpleTestModel: a single Linear(10, 5)."""

    def __init__(self, key):
        in_features, out_features = IN_FEATURES, OUT_FEATURES
        k_w, k_b = jax.random.split(key)
        # Deterministic init mimicking PyTorch's uniform(-1/sqrt(in), 1/sqrt(in)).
        bound = 1.0 / jnp.sqrt(jnp.float32(in_features))
        # Logical params, stored in [IN, OUT] (transpose of PyTorch's [OUT, IN]).
        self.weight = jax.random.uniform(
            k_w, (in_features, out_features), jnp.float32, -bound, bound
        )
        self.bias = jax.random.uniform(
            k_b, (out_features,), jnp.float32, -bound, bound
        )
        # One-time lane-dense padding of the parameters.
        self.weight_padded = (
            jnp.zeros((LANE, LANE), jnp.float32)
            .at[:in_features, :out_features].set(self.weight)
        )
        self.bias_padded = (
            jnp.zeros((1, LANE), jnp.float32).at[0, :out_features].set(self.bias)
        )

    def __call__(self, x):
        return linear_pallas(
            x, self.weight_padded, self.bias_padded,
            in_features=IN_FEATURES, out_features=OUT_FEATURES,
        )


if __name__ == "__main__":
    key = jax.random.PRNGKey(0)
    k_model, k_x = jax.random.split(key)

    model = SimpleTestModelPallas(k_model)

    batch = 8
    x = jax.random.normal(k_x, (batch, IN_FEATURES), jnp.float32)

    y = model(x)
    jax.block_until_ready(y)

    # Sanity check against plain-JAX reference of the same math.
    y_ref = x @ model.weight + model.bias
    assert y.shape == (batch, OUT_FEATURES)
    assert jnp.allclose(y, y_ref, atol=1e-5, rtol=1e-5)

    print("KERNEL_OK")
</pallas_src>

<mosaic_0001>
module attributes {stable_mosaic.version = 11 : i64} {
  func.func @_linear_kernel(%arg0: memref<8x128xf32, #tpu.memory_space<vmem>>, %arg1: memref<128x128xf32, #tpu.memory_space<vmem>>, %arg2: memref<1x128xf32, #tpu.memory_space<vmem>>, %arg3: memref<8x128xf32, #tpu.memory_space<vmem>>) attributes {dimension_semantics = [], scalar_prefetch = 0 : i64, scratch_operands = 0 : i64, tpu.core_type = #tpu.core_type<tc>} {
    %c0 = arith.constant 0 : index
    %c0_0 = arith.constant 0 : index
    %0 = vector.load %arg0[%c0, %c0_0] : memref<8x128xf32, #tpu.memory_space<vmem>>, vector<8x128xf32>
    %c0_1 = arith.constant 0 : index
    %c0_2 = arith.constant 0 : index
    %1 = vector.load %arg1[%c0_1, %c0_2] : memref<128x128xf32, #tpu.memory_space<vmem>>, vector<128x128xf32>
    %c0_3 = arith.constant 0 : index
    %c0_4 = arith.constant 0 : index
    %2 = vector.load %arg2[%c0_3, %c0_4] : memref<1x128xf32, #tpu.memory_space<vmem>>, vector<1x128xf32>
    %3 = vector.shape_cast %2 : vector<1x128xf32> to vector<1x128xf32>
    %4 = vector.broadcast %3 : vector<1x128xf32> to vector<8x128xf32>
    %5 = vector.extract_strided_slice %0 {offsets = [0, 0], sizes = [8, 1], strides = [1, 1]} : vector<8x128xf32> to vector<8x1xf32>
    %6 = vector.extract_strided_slice %1 {offsets = [0, 0], sizes = [1, 128], strides = [1, 1]} : vector<128x128xf32> to vector<1x128xf32>
    %7 = vector.broadcast %5 : vector<8x1xf32> to vector<8x128xf32>
    %8 = vector.broadcast %6 : vector<1x128xf32> to vector<8x128xf32>
    %9 = arith.mulf %7, %8 : vector<8x128xf32>
    %10 = arith.addf %4, %9 : vector<8x128xf32>
    %11 = vector.extract_strided_slice %0 {offsets = [0, 1], sizes = [8, 1], strides = [1, 1]} : vector<8x128xf32> to vector<8x1xf32>
    %12 = vector.extract_strided_slice %1 {offsets = [1, 0], sizes = [1, 128], strides = [1, 1]} : vector<128x128xf32> to vector<1x128xf32>
    %13 = vector.broadcast %11 : vector<8x1xf32> to vector<8x128xf32>
    %14 = vector.broadcast %12 : vector<1x128xf32> to vector<8x128xf32>
    %15 = arith.mulf %13, %14 : vector<8x128xf32>
    %16 = arith.addf %10, %15 : vector<8x128xf32>
    %17 = vector.extract_strided_slice %0 {offsets = [0, 2], sizes = [8, 1], strides = [1, 1]} : vector<8x128xf32> to vector<8x1xf32>
    %18 = vector.extract_strided_slice %1 {offsets = [2, 0], sizes = [1, 128], strides = [1, 1]} : vector<128x128xf32> to vector<1x128xf32>
    %19 = vector.broadcast %17 : vector<8x1xf32> to vector<8x128xf32>
    %20 = vector.broadcast %18 : vector<1x128xf32> to vector<8x128xf32>
    %21 = arith.mulf %19, %20 : vector<8x128xf32>
    %22 = arith.addf %16, %21 : vector<8x128xf32>
    %23 = vector.extract_strided_slice %0 {offsets = [0, 3], sizes = [8, 1], strides = [1, 1]} : vector<8x128xf32> to vector<8x1xf32>
    %24 = vector.extract_strided_slice %1 {offsets = [3, 0], sizes = [1, 128], strides = [1, 1]} : vector<128x128xf32> to vector<1x128xf32>
    %25 = vector.broadcast %23 : vector<8x1xf32> to vector<8x128xf32>
    %26 = vector.broadcast %24 : vector<1x128xf32> to vector<8x128xf32>
    %27 = arith.mulf %25, %26 : vector<8x128xf32>
    %28 = arith.addf %22, %27 : vector<8x128xf32>
    %29 = vector.extract_strided_slice %0 {offsets = [0, 4], sizes = [8, 1], strides = [1, 1]} : vector<8x128xf32> to vector<8x1xf32>
    %30 = vector.extract_strided_slice %1 {offsets = [4, 0], sizes = [1, 128], strides = [1, 1]} : vector<128x128xf32> to vector<1x128xf32>
    %31 = vector.broadcast %29 : vector<8x1xf32> to vector<8x128xf32>
    %32 = vector.broadcast %30 : vector<1x128xf32> to vector<8x128xf32>
    %33 = arith.mulf %31, %32 : vector<8x128xf32>
    %34 = arith.addf %28, %33 : vector<8x128xf32>
    %35 = vector.extract_strided_slice %0 {offsets = [0, 5], sizes = [8, 1], strides = [1, 1]} : vector<8x128xf32> to vector<8x1xf32>
    %36 = vector.extract_strided_slice %1 {offsets = [5, 0], sizes = [1, 128], strides = [1, 1]} : vector<128x128xf32> to vector<1x128xf32>
    %37 = vector.broadcast %35 : vector<8x1xf32> to vector<8x128xf32>
    %38 = vector.broadcast %36 : vector<1x128xf32> to vector<8x128xf32>
    %39 = arith.mulf %37, %38 : vector<8x128xf32>
    %40 = arith.addf %34, %39 : vector<8x128xf32>
    %41 = vector.extract_strided_slice %0 {offsets = [0, 6], sizes = [8, 1], strides = [1, 1]} : vector<8x128xf32> to vector<8x1xf32>
    %42 = vector.extract_strided_slice %1 {offsets = [6, 0], sizes = [1, 128], strides = [1, 1]} : vector<128x128xf32> to vector<1x128xf32>
    %43 = vector.broadcast %41 : vector<8x1xf32> to vector<8x128xf32>
    %44 = vector.broadcast %42 : vector<1x128xf32> to vector<8x128xf32>
    %45 = arith.mulf %43, %44 : vector<8x128xf32>
    %46 = arith.addf %40, %45 : vector<8x128xf32>
    %47 = vector.extract_strided_slice %0 {offsets = [0, 7], sizes = [8, 1], strides = [1, 1]} : vector<8x128xf32> to vector<8x1xf32>
    %48 = vector.extract_strided_slice %1 {offsets = [7, 0], sizes = [1, 128], strides = [1, 1]} : vector<128x128xf32> to vector<1x128xf32>
    %49 = vector.broadcast %47 : vector<8x1xf32> to vector<8x128xf32>
    %50 = vector.broadcast %48 : vector<1x128xf32> to vector<8x128xf32>
    %51 = arith.mulf %49, %50 : vector<8x128xf32>
    %52 = arith.addf %46, %51 : vector<8x128xf32>
    %53 = vector.extract_strided_slice %0 {offsets = [0, 8], sizes = [8, 1], strides = [1, 1]} : vector<8x128xf32> to vector<8x1xf32>
    %54 = vector.extract_strided_slice %1 {offsets = [8, 0], sizes = [1, 128], strides = [1, 1]} : vector<128x128xf32> to vector<1x128xf32>
    %55 = vector.broadcast %53 : vector<8x1xf32> to vector<8x128xf32>
    %56 = vector.broadcast %54 : vector<1x128xf32> to vector<8x128xf32>
    %57 = arith.mulf %55, %56 : vector<8x128xf32>
    %58 = arith.addf %52, %57 : vector<8x128xf32>
    %59 = vector.extract_strided_slice %0 {offsets = [0, 9], sizes = [8, 1], strides = [1, 1]} : vector<8x128xf32> to vector<8x1xf32>
    %60 = vector.extract_strided_slice %1 {offsets = [9, 0], sizes = [1, 128], strides = [1, 1]} : vector<128x128xf32> to vector<1x128xf32>
    %61 = vector.broadcast %59 : vector<8x1xf32> to vector<8x128xf32>
    %62 = vector.broadcast %60 : vector<1x128xf32> to vector<8x128xf32>
    %63 = arith.mulf %61, %62 : vector<8x128xf32>
    %64 = arith.addf %58, %63 : vector<8x128xf32>
    %c0_5 = arith.constant 0 : index
    %c0_6 = arith.constant 0 : index
    %65 = vector.load %arg3[%c0_5, %c0_6] : memref<8x128xf32, #tpu.memory_space<vmem>>, vector<8x128xf32>
    tpu.vector_store %arg3[%c0_5, %c0_6], %64 {strides = array<i32>} : memref<8x128xf32, #tpu.memory_space<vmem>>, vector<8x128xf32>,
    return
  }
}

</mosaic_0001>

<llo_original>
// kernel: tpu_custom_call.1
$region0: #{tpu_custom_call.1}
  #allocation0 [shape = 'u32[]', space=smem, size = 0x4, offset = 0x4, fixed_abs, tag = 'smem constant byte address 0x4 - core index']
  #allocation1 [shape = 'u32[72,128]{1,0:T(1,128)}', space=vmem, size = 0x9000, scoped, tag = 'internal scratch']
  %s0 = inlined_call_operand.hbm [shape: f32[8,128], index: 0, kind: input, shape index: {}]
  %s1 = inlined_call_operand.hbm [shape: f32[128,128], index: 1, kind: input, shape index: {}]
  %s2 = inlined_call_operand.vmem [shape: f32[1,128], index: 2, kind: input, shape index: {}]
  %s3 = inlined_call_operand.hbm [shape: f32[8,128], index: 3, kind: output, shape index: {}]
  %s4 = sld [smem:[#allocation0]]
  $region30: #{tpu_custom_call.1} parent=0
    _
  %s6 = ssub.s32 1, %s4
  %s7 = scalar_select 0, %s6, %s4
  $region1: #{tpu_custom_call.1} parent=0
    #allocation2 [shape = 'u8[4096]{0}', space=vmem, size = 0x1000, scoped, tag = 'input window, operand 0, single buffered']
    #allocation3 [shape = 's32[1]{0}', space=sflag, size = 0x4, scoped, tag = 'scoped memory for tpu_custom_call.1']
    #allocation4 [shape = 's32[1]{0}', space=sflag, size = 0x4, scoped, tag = 'scoped memory for tpu_custom_call.1']
    #allocation5 [shape = 'u8[65536]{0}', space=vmem, size = 0x10000, scoped, tag = 'input window, operand 1, single buffered']
    #allocation6 [shape = 's32[1]{0}', space=sflag, size = 0x4, scoped, tag = 'scoped memory for tpu_custom_call.1']
    #allocation7 [shape = 'u8[4096]{0}', space=vmem, size = 0x1000, scoped, tag = 'output window, operand 0, single buffered']
    %8 = vsyncpa [#allocation3], 0
    %9 = vsyncpa [#allocation6], 0
    %10 = vsyncpa [#allocation4], 0
    // Predicated region
    $region2: #{tpu_custom_call.1} parent=1 // pred_check
      _
    $region3: #{tpu_custom_call.1} parent=1 // pred_check_branch
      %12 = sbr.rel (0) target = $region5
    $region4: #{tpu_custom_call.1} parent=1 // pred_region
      %14 = vsyncadd [#allocation3], 0
      %s16 = sshll.u32 %s0, 4
      %s17 = int_to_ptr.hbm [resolvable:$true] %s16
      %s18 = sshll.u32 [#allocation2], 4
      %s19 = int_to_ptr.vmem [resolvable:$true] %s18
      %21 = dma.hbm_to_vmem [thread:$0]  %s17, 128, %s19, [#allocation3]
    $region5: #{tpu_custom_call.1} parent=1 // pred_fallthru
      _
    // Predicated region
    $region6: #{tpu_custom_call.1} parent=1 // pred_check
      _
    $region7: #{tpu_custom_call.1} parent=1 // pred_check_branch
      %23 = sbr.rel (0) target = $region9
    $region8: #{tpu_custom_call.1} parent=1 // pred_region
      %25 = vsyncadd [#allocation6], 0
      %s26 = sshll.u32 %s1, 4
      %s27 = int_to_ptr.hbm [resolvable:$true] %s26
      %s28 = sshll.u32 [#allocation5], 4
      %s29 = int_to_ptr.vmem [resolvable:$true] %s28
      %34 = dma.hbm_to_vmem [thread:$0]  %s27, 2048, %s29, [#allocation6], 128, 128, 8
    $region9: #{tpu_custom_call.1} parent=1 // pred_fallthru
      _
    // Predicated region
    $region10: #{tpu_custom_call.1} parent=1 // pred_check
      _
    $region11: #{tpu_custom_call.1} parent=1 // pred_check_branch
      %36 = sbr.rel (0) target = $region13
    $region12: #{tpu_custom_call.1} parent=1 // pred_region
      _
    $region13: #{tpu_custom_call.1} parent=1 // pred_fallthru
      _
    // Predicated region
    $region14: #{tpu_custom_call.1} parent=1 // pred_check
      _
    $region15: #{tpu_custom_call.1} parent=1 // pred_check_branch
      %38 = sbr.rel (0) target = $region17
    $region16: #{tpu_custom_call.1} parent=1 // pred_region
      %40 = dma.done [#allocation3], 128
    $region17: #{tpu_custom_call.1} parent=1 // pred_fallthru
      _
    // Predicated region
    $region18: #{tpu_custom_call.1} parent=1 // pred_check
      _
    $region19: #{tpu_custom_call.1} parent=1 // pred_check_branch
      %42 = sbr.rel (0) target = $region21
    $region20: #{tpu_custom_call.1} parent=1 // pred_region
      %44 = dma.done [#allocation6], 2048
    $region21: #{tpu_custom_call.1} parent=1 // pred_fallthru
      _
    %v45 = vld [vmem:[#allocation2] sm:$0xff]
    %v46 = vld [vmem:[#allocation5] sm:$0xff]
    %v47 = vld [vmem:[#allocation5 + $0x8] sm:$0xff]
    %v48 = vld [vmem:[%s2] sm:$0x1]
    %v50 = vperm.slane %v48, 0
    %53 = vset.pattern.permute.xlu0 0
    %54 = vperm.xlu0 %53, %v45
    %v55 = vpop.permute.xlu0 %54
    %v57 = vperm.slane %v46, 0
    %v58 = vmul.f32 %v55, %v57
    %v59 = vadd.f32 %v50, %v58
    %60 = vset.pattern.permute.xlu0 1
    %61 = vperm.xlu0 %60, %v45
    %v62 = vpop.permute.xlu0 %61
    %v64 = vperm.slane %v46, 1
    %v65 = vmul.f32 %v62, %v64
    %v66 = vadd.f32 %v59, %v65
    %67 = vset.pattern.permute.xlu0 2
    %68 = vperm.xlu0 %67, %v45
    %v69 = vpop.permute.xlu0 %68
    %v71 = vperm.slane %v46, 2
    %v72 = vmul.f32 %v69, %v71
    %v73 = vadd.f32 %v66, %v72
    %74 = vset.pattern.permute.xlu0 3
    %75 = vperm.xlu0 %74, %v45
    %v76 = vpop.permute.xlu0 %75
    %v78 = vperm.slane %v46, 3
    %v79 = vmul.f32 %v76, %v78
    %v80 = vadd.f32 %v73, %v79
    %81 = vset.pattern.permute.xlu0 4
    %82 = vperm.xlu0 %81, %v45
    %v83 = vpop.permute.xlu0 %82
    %v85 = vperm.slane %v46, 4
    %v86 = vmul.f32 %v83, %v85
    %v87 = vadd.f32 %v80, %v86
    %88 = vset.pattern.permute.xlu0 5
    %89 = vperm.xlu0 %88, %v45
    %v90 = vpop.permute.xlu0 %89
    %v92 = vperm.slane %v46, 5
    %v93 = vmul.f32 %v90, %v92
    %v94 = vadd.f32 %v87, %v93
    %95 = vset.pattern.permute.xlu0 6
    %96 = vperm.xlu0 %95, %v45
    %v97 = vpop.permute.xlu0 %96
    %v99 = vperm.slane %v46, 6
    %v100 = vmul.f32 %v97, %v99
    %v101 = vadd.f32 %v94, %v100
    %102 = vset.pattern.permute.xlu0 7
    %103 = vperm.xlu0 %102, %v45
    %v104 = vpop.permute.xlu0 %103
    %v106 = vperm.slane %v46, 7
    %v107 = vmul.f32 %v104, %v106
    %v108 = vadd.f32 %v101, %v107
    %109 = vset.pattern.permute.xlu0 8
    %110 = vperm.xlu0 %109, %v45
    %v111 = vpop.permute.xlu0 %110
    %v113 = vperm.slane %v47, 0
    %v114 = vmul.f32 %v111, %v113
    %v115 = vadd.f32 %v108, %v114
    %116 = vset.pattern.permute.xlu0 9
    %117 = vperm.xlu0 %116, %v45
    %v118 = vpop.permute.xlu0 %117
    %v120 = vperm.slane %v47, 1
    %v121 = vmul.f32 %v118, %v120
    %v122 = vadd.f32 %v115, %v121
    %123 = vst [vmem:[#allocation7] sm:$0xff] %v122
    // Predicated region
    $region22: #{tpu_custom_call.1} parent=1 // pred_check
      _
    $region23: #{tpu_custom_call.1} parent=1 // pred_check_branch
      %125 = sbr.rel (0) target = $region25
    $region24: #{tpu_custom_call.1} parent=1 // pred_region
      %127 = vsyncadd [#allocation4], 0
      %s129 = sshll.u32 [#allocation7], 4
      %s130 = int_to_ptr.vmem [resolvable:$true] %s129
      %s131 = sshll.u32 %s3, 4
      %s132 = int_to_ptr.hbm [resolvable:$true] %s131
      %134 = dma.vmem_to_hbm [thread:$0]  %s130, 128, %s132, [#allocation4]
    $region25: #{tpu_custom_call.1} parent=1 // pred_fallthru
      _
    // Predicated region
    $region26: #{tpu_custom_call.1} parent=1 // pred_check
      _
    $region27: #{tpu_custom_call.1} parent=1 // pred_check_branch
      %136 = sbr.rel (0) target = $region29
    $region28: #{tpu_custom_call.1} parent=1 // pred_region
      %138 = dma.done [#allocation4], 128
    $region29: #{tpu_custom_call.1} parent=1 // pred_fallthru
      _
    %139 = vsyncpa [#allocation3], 1
    %140 = vsyncpa [#allocation6], 1
    %141 = vsyncpa [#allocation4], 1

</llo_original>
